<compile_context>
chip_gen: v5e
topology: v5e:2x2
jax: 0.10.0
libtpu: 0.0.40
codegen_flags: <defaults>
</compile_context>

<pallas_src>
import jax
import jax.numpy as jnp
from jax.experimental import pallas as pl
from jax.experimental.pallas import tpu as pltpu


def mysequential_kernel(x_ref, w1_ref, b1_ref, w2_ref, b2_ref, o_ref):
    # Block 0: nn.Linear(Din, Dhid) — bf16 operands on the MXU, f32 accumulate.
    h = jnp.dot(x_ref[...].astype(jnp.bfloat16), w1_ref[...],
                preferred_element_type=jnp.float32) + b1_ref[...]
    # Block 1: nn.ReLU() — f32 elementwise on the VPU.
    h = jnp.maximum(h, 0.0)
    # Block 2: nn.Linear(Dhid, Dout_padded) — bf16 operands, f32 accumulate.
    out = jnp.dot(h.astype(jnp.bfloat16), w2_ref[...],
                  preferred_element_type=jnp.float32) + b2_ref[...]
    o_ref[...] = out.astype(o_ref.dtype)


def mysequential_forward(x, w1, b1, w2, b2, *, tm=512):
    """Fused Linear(Din,Dhid) -> ReLU -> Linear(Dhid,Dout) forward pass."""
    B, Din = x.shape
    Dhid = w1.shape[1]
    Dout = w2.shape[1]

    # Lane-dense output: pad the last dim to a multiple of 128.
    Dout_p = max(128, ((Dout + 127) // 128) * 128)
    w2_p = jnp.pad(w2, ((0, 0), (0, Dout_p - Dout)))
    b2_p = jnp.pad(b2, ((0, 0), (0, Dout_p - Dout)))

    # Cast weights to bf16 once (host/wrapper side); biases stay f32.
    w1_b = w1.astype(jnp.bfloat16)
    w2_b = w2_p.astype(jnp.bfloat16)

    # Batch tiling: one block if the batch fits, otherwise pad to a multiple
    # of tm (tm is a multiple of 8, satisfying the sublane constraint).
    if B <= tm:
        tm_eff = B
        Bp = B
        x_p = x
    else:
        tm_eff = tm
        Bp = pl.cdiv(B, tm) * tm
        x_p = jnp.pad(x, ((0, Bp - B), (0, 0)))
    grid = (Bp // tm_eff,)

    flops = 2 * Bp * (Din * Dhid + Dhid * Dout_p)
    bytes_accessed = (x_p.size * 4 + w1_b.size * 2 + b1.size * 4
                      + w2_b.size * 2 + b2_p.size * 4 + Bp * Dout_p * 4)

    out_p = pl.pallas_call(
        mysequential_kernel,
        out_shape=jax.ShapeDtypeStruct((Bp, Dout_p), jnp.float32),
        grid_spec=pltpu.PrefetchScalarGridSpec(
            num_scalar_prefetch=0,
            grid=grid,
            in_specs=[
                # Activations: tiled over the batch grid axis.
                pl.BlockSpec((tm_eff, Din), lambda i: (i, 0)),
                # Weights / biases: constant block index -> VMEM-resident
                # across all grid steps.
                pl.BlockSpec((Din, Dhid), lambda i: (0, 0)),
                pl.BlockSpec((1, Dhid), lambda i: (0, 0)),
                pl.BlockSpec((Dhid, Dout_p), lambda i: (0, 0)),
                pl.BlockSpec((1, Dout_p), lambda i: (0, 0)),
            ],
            out_specs=pl.BlockSpec((tm_eff, Dout_p), lambda i: (i, 0)),
        ),
        compiler_params=pltpu.CompilerParams(
            dimension_semantics=("parallel",),
        ),
        cost_estimate=pl.CostEstimate(
            flops=flops, transcendentals=0, bytes_accessed=bytes_accessed),
    )(x_p, w1_b, b1, w2_b, b2_p)

    # Slice away batch padding and the lane padding of the output dim.
    return out_p[:B, :Dout]


if __name__ == "__main__":
    B, Din, Dhid, Dout = 2, 20, 256, 10

    key = jax.random.PRNGKey(0)
    kx, kw1, kb1, kw2, kb2 = jax.random.split(key, 5)

    # Deterministic parameter init (PyTorch-style uniform bounds).
    bound1 = 1.0 / jnp.sqrt(Din)
    bound2 = 1.0 / jnp.sqrt(Dhid)
    x = jax.random.normal(kx, (B, Din), dtype=jnp.float32)
    w1 = jax.random.uniform(kw1, (Din, Dhid), jnp.float32, -bound1, bound1)
    b1 = jax.random.uniform(kb1, (1, Dhid), jnp.float32, -bound1, bound1)
    w2 = jax.random.uniform(kw2, (Dhid, Dout), jnp.float32, -bound2, bound2)
    b2 = jax.random.uniform(kb2, (1, Dout), jnp.float32, -bound2, bound2)

    out = mysequential_forward(x, w1, b1, w2, b2)
    jax.block_until_ready(out)
    assert out.shape == (B, Dout)

    # Reference 1: same numerics as the kernel (bf16 operands, f32 accum).
    h_ref = jnp.dot(x.astype(jnp.bfloat16), w1.astype(jnp.bfloat16),
                    preferred_element_type=jnp.float32) + b1
    h_ref = jnp.maximum(h_ref, 0.0)
    ref_bf16 = jnp.dot(h_ref.astype(jnp.bfloat16), w2.astype(jnp.bfloat16),
                       preferred_element_type=jnp.float32) + b2
    assert jnp.allclose(out, ref_bf16, atol=1e-4, rtol=1e-4)

    # Reference 2: pure-f32 sequential forward (semantic sanity, looser tol
    # because the kernel feeds bf16 operands to the MXU).
    ref_f32 = jnp.maximum(x @ w1 + b1, 0.0) @ w2 + b2
    assert jnp.allclose(out, ref_f32, atol=3e-2, rtol=3e-2)

    print("KERNEL_OK")
</pallas_src>

<mosaic_0001>
module attributes {stable_mosaic.version = 11 : i64} {
  func.func @mysequential_kernel(%arg0: i32, %arg1: memref<2x20xf32, #tpu.memory_space<vmem>>, %arg2: memref<20x256xbf16, #tpu.memory_space<vmem>>, %arg3: memref<1x256xf32, #tpu.memory_space<vmem>>, %arg4: memref<256x128xbf16, #tpu.memory_space<vmem>>, %arg5: memref<1x128xf32, #tpu.memory_space<vmem>>, %arg6: memref<2x128xf32, #tpu.memory_space<vmem>>) attributes {dimension_semantics = [#tpu.dimension_semantics<parallel>], iteration_bounds = array<i64: 1>, scalar_prefetch = 0 : i64, scratch_operands = 0 : i64, tpu.core_type = #tpu.core_type<tc>, window_params = [{transform_indices = @transform_0, window_bounds = array<i64: 2, 20>}, {pipeline_mode = #tpu.pipeline_mode<synchronous>, transform_indices = @transform_1, window_bounds = array<i64: 20, 256>}, {pipeline_mode = #tpu.pipeline_mode<synchronous>, transform_indices = @transform_2, window_bounds = array<i64: 1, 256>}, {pipeline_mode = #tpu.pipeline_mode<synchronous>, transform_indices = @transform_3, window_bounds = array<i64: 256, 128>}, {pipeline_mode = #tpu.pipeline_mode<synchronous>, transform_indices = @transform_4, window_bounds = array<i64: 1, 128>}, {transform_indices = @transform_5, window_bounds = array<i64: 2, 128>}]} {
    %c0 = arith.constant 0 : index
    %c0_0 = arith.constant 0 : index
    %0 = vector.load %arg1[%c0, %c0_0] : memref<2x20xf32, #tpu.memory_space<vmem>>, vector<2x20xf32>
    %1 = arith.truncf %0 : vector<2x20xf32> to vector<2x20xbf16>
    %c0_1 = arith.constant 0 : index
    %c0_2 = arith.constant 0 : index
    %2 = vector.load %arg2[%c0_1, %c0_2] : memref<20x256xbf16, #tpu.memory_space<vmem>>, vector<20x256xbf16>
    %cst = arith.constant dense<0.000000e+00> : vector<2x256xf32>
    %3 = tpu.matmul %1, %2, %cst {dimension_numbers = #tpu.dot_dimension_numbers<[1], [0], [0], [1], [0, 0, 1, 1], [], []>} : vector<2x20xbf16>, vector<20x256xbf16>, vector<2x256xf32> -> vector<2x256xf32>
    %c0_3 = arith.constant 0 : index
    %c0_4 = arith.constant 0 : index
    %4 = vector.load %arg3[%c0_3, %c0_4] : memref<1x256xf32, #tpu.memory_space<vmem>>, vector<1x256xf32>
    %5 = vector.broadcast %4 : vector<1x256xf32> to vector<2x256xf32>
    %6 = arith.addf %3, %5 : vector<2x256xf32>
    %cst_5 = arith.constant 0.000000e+00 : f32
    %7 = vector.broadcast %cst_5 : f32 to vector<2x256xf32>
    %8 = arith.maximumf %6, %7 : vector<2x256xf32>
    %9 = arith.truncf %8 : vector<2x256xf32> to vector<2x256xbf16>
    %c0_6 = arith.constant 0 : index
    %c0_7 = arith.constant 0 : index
    %10 = vector.load %arg4[%c0_6, %c0_7] : memref<256x128xbf16, #tpu.memory_space<vmem>>, vector<256x128xbf16>
    %cst_8 = arith.constant dense<0.000000e+00> : vector<2x128xf32>
    %11 = tpu.matmul %9, %10, %cst_8 {dimension_numbers = #tpu.dot_dimension_numbers<[1], [0], [0], [1], [0, 0, 1, 1], [], []>} : vector<2x256xbf16>, vector<256x128xbf16>, vector<2x128xf32> -> vector<2x128xf32>
    %c0_9 = arith.constant 0 : index
    %c0_10 = arith.constant 0 : index
    %12 = vector.load %arg5[%c0_9, %c0_10] : memref<1x128xf32, #tpu.memory_space<vmem>>, vector<1x128xf32>
    %13 = vector.broadcast %12 : vector<1x128xf32> to vector<2x128xf32>
    %14 = arith.addf %11, %13 : vector<2x128xf32>
    %c0_11 = arith.constant 0 : index
    %c0_12 = arith.constant 0 : index
    %15 = vector.load %arg6[%c0_11, %c0_12] : memref<2x128xf32, #tpu.memory_space<vmem>>, vector<2x128xf32>
    tpu.vector_store %arg6[%c0_11, %c0_12], %14 {strides = array<i32>} : memref<2x128xf32, #tpu.memory_space<vmem>>, vector<2x128xf32>,
    return
  }
  func.func @transform_0(%arg0: i32) -> (i32, i32) {
    %c0_i32 = arith.constant 0 : i32
    %c0_i32_0 = arith.constant 0 : i32
    return %arg0, %c0_i32 : i32, i32
  }
  func.func @transform_1(%arg0: i32) -> (i32, i32) {
    %c0_i32 = arith.constant 0 : i32
    %c0_i32_0 = arith.constant 0 : i32
    %c0_i32_1 = arith.constant 0 : i32
    return %c0_i32, %c0_i32_0 : i32, i32
  }
  func.func @transform_2(%arg0: i32) -> (i32, i32) {
    %c0_i32 = arith.constant 0 : i32
    %c0_i32_0 = arith.constant 0 : i32
    %c0_i32_1 = arith.constant 0 : i32
    return %c0_i32, %c0_i32_0 : i32, i32
  }
  func.func @transform_3(%arg0: i32) -> (i32, i32) {
    %c0_i32 = arith.constant 0 : i32
    %c0_i32_0 = arith.constant 0 : i32
    %c0_i32_1 = arith.constant 0 : i32
    return %c0_i32, %c0_i32_0 : i32, i32
  }
  func.func @transform_4(%arg0: i32) -> (i32, i32) {
    %c0_i32 = arith.constant 0 : i32
    %c0_i32_0 = arith.constant 0 : i32
    %c0_i32_1 = arith.constant 0 : i32
    return %c0_i32, %c0_i32_0 : i32, i32
  }
  func.func @transform_5(%arg0: i32) -> (i32, i32) {
    %c0_i32 = arith.constant 0 : i32
    %c0_i32_0 = arith.constant 0 : i32
    return %arg0, %c0_i32 : i32, i32
  }
}

</mosaic_0001>

<llo_original>
// kernel: tpu_custom_call.1
$region0: #{tpu_custom_call.1}
  #allocation0 [shape = 'u32[]', space=smem, size = 0x4, offset = 0x4, fixed_abs, tag = 'smem constant byte address 0x4 - core index']
  #allocation1 [shape = 'u32[72,128]{1,0:T(1,128)}', space=vmem, size = 0x9000, scoped, tag = 'internal scratch']
  %s0 = inlined_call_operand.hbm [shape: f32[2,20], index: 0, kind: input, shape index: {}]
  %s1 = inlined_call_operand.hbm [shape: bf16[20,256], index: 1, kind: input, shape index: {}]
  %s2 = inlined_call_operand.hbm [shape: f32[1,256], index: 2, kind: input, shape index: {}]
  %s3 = inlined_call_operand.hbm [shape: bf16[256,128], index: 3, kind: input, shape index: {}]
  %s4 = inlined_call_operand.vmem [shape: f32[1,128], index: 4, kind: input, shape index: {}]
  %s5 = inlined_call_operand.hbm [shape: f32[2,128], index: 5, kind: output, shape index: {}]
  %s6 = sld [smem:[#allocation0]]
  $region46: #{tpu_custom_call.1} parent=0
    _
  %s8 = ssub.s32 1, %s6
  %s9 = scalar_select 0, %s8, %s6
  $region1: #{tpu_custom_call.1} parent=0
    #allocation2 [shape = 'u8[1024]{0}', space=vmem, size = 0x400, scoped, tag = 'input window, operand 0, single buffered']
    #allocation3 [shape = 's32[1]{0}', space=sflag, size = 0x4, scoped, tag = 'scoped memory for tpu_custom_call.1']
    #allocation4 [shape = 's32[1]{0}', space=sflag, size = 0x4, scoped, tag = 'scoped memory for tpu_custom_call.1']
    #allocation5 [shape = 'u8[12288]{0}', space=vmem, size = 0x3000, scoped, tag = 'input window, operand 1, single buffered']
    #allocation6 [shape = 's32[1]{0}', space=sflag, size = 0x4, scoped, tag = 'scoped memory for tpu_custom_call.1']
    #allocation7 [shape = 'u8[1024]{0}', space=vmem, size = 0x400, scoped, tag = 'input window, operand 2, single buffered']
    #allocation8 [shape = 'u8[65536]{0}', space=vmem, size = 0x10000, scoped, tag = 'input window, operand 3, single buffered']
    #allocation9 [shape = 's32[1]{0}', space=sflag, size = 0x4, scoped, tag = 'scoped memory for tpu_custom_call.1']
    #allocation10 [shape = 'u8[1024]{0}', space=vmem, size = 0x400, scoped, tag = 'output window, operand 0, single buffered']
    %10 = vsyncpa [#allocation3], 0
    %11 = vsyncpa [#allocation6], 0
    %12 = vsyncpa [#allocation9], 0
    %13 = vsyncpa [#allocation4], 0
    // Predicated region
    $region2: #{tpu_custom_call.1} parent=1 // pred_check
      _
    $region3: #{tpu_custom_call.1} parent=1 // pred_check_branch
      %15 = sbr.rel (0) target = $region5
    $region4: #{tpu_custom_call.1} parent=1 // pred_region
      %17 = vsyncadd [#allocation3], 0
      %s19 = sshll.u32 %s0, 4
      %s20 = int_to_ptr.hbm [resolvable:$true] %s19
      %s21 = sshll.u32 [#allocation2], 4
      %s22 = int_to_ptr.vmem [resolvable:$true] %s21
      %24 = dma.hbm_to_vmem [thread:$0]  %s20, 32, %s22, [#allocation3]
    $region5: #{tpu_custom_call.1} parent=1 // pred_fallthru
      _
    // Predicated region
    $region6: #{tpu_custom_call.1} parent=1 // pred_check
      _
    $region7: #{tpu_custom_call.1} parent=1 // pred_check_branch
      %26 = sbr.rel (0) target = $region9
    $region8: #{tpu_custom_call.1} parent=1 // pred_region
      %28 = vsyncadd [#allocation6], 0
      %s29 = sshll.u32 %s1, 4
      %s30 = int_to_ptr.hbm [resolvable:$true] %s29
      %s31 = sshll.u32 [#allocation5], 4
      %s32 = int_to_ptr.vmem [resolvable:$true] %s31
      %37 = dma.hbm_to_vmem [thread:$0]  %s30, 384, %s32, [#allocation6], 128, 128, 8
    $region9: #{tpu_custom_call.1} parent=1 // pred_fallthru
      _
    // Predicated region
    $region10: #{tpu_custom_call.1} parent=1 // pred_check
      _
    $region11: #{tpu_custom_call.1} parent=1 // pred_check_branch
      %39 = sbr.rel (0) target = $region13
    $region12: #{tpu_custom_call.1} parent=1 // pred_region
      %41 = vsyncadd [#allocation6], 0
      %s43 = sshll.u32 %s2, 4
      %s44 = int_to_ptr.hbm [resolvable:$true] %s43
      %s45 = sshll.u32 [#allocation7], 4
      %s46 = int_to_ptr.vmem [resolvable:$true] %s45
      %48 = dma.hbm_to_vmem [thread:$0]  %s44, 32, %s46, [#allocation6]
    $region13: #{tpu_custom_call.1} parent=1 // pred_fallthru
      _
    // Predicated region
    $region14: #{tpu_custom_call.1} parent=1 // pred_check
      _
    $region15: #{tpu_custom_call.1} parent=1 // pred_check_branch
      %50 = sbr.rel (0) target = $region17
    $region16: #{tpu_custom_call.1} parent=1 // pred_region
      %52 = vsyncadd [#allocation9], 0
      %s53 = sshll.u32 %s3, 4
      %s54 = int_to_ptr.hbm [resolvable:$true] %s53
      %s55 = sshll.u32 [#allocation8], 4
      %s56 = int_to_ptr.vmem [resolvable:$true] %s55
      %61 = dma.hbm_to_vmem [thread:$0]  %s54, 2048, %s56, [#allocation9], 64, 64, 4
    $region17: #{tpu_custom_call.1} parent=1 // pred_fallthru
      _
    // Predicated region
    $region18: #{tpu_custom_call.1} parent=1 // pred_check
      _
    $region19: #{tpu_custom_call.1} parent=1 // pred_check_branch
      %63 = sbr.rel (0) target = $region21
    $region20: #{tpu_custom_call.1} parent=1 // pred_region
      _
    $region21: #{tpu_custom_call.1} parent=1 // pred_fallthru
      _
    // Predicated region
    $region22: #{tpu_custom_call.1} parent=1 // pred_check
      _
    $region23: #{tpu_custom_call.1} parent=1 // pred_check_branch
      %65 = sbr.rel (0) target = $region25
    $region24: #{tpu_custom_call.1} parent=1 // pred_region
      %67 = dma.done [#allocation3], 32
    $region25: #{tpu_custom_call.1} parent=1 // pred_fallthru
      _
    // Predicated region
    $region26: #{tpu_custom_call.1} parent=1 // pred_check
      _
    $region27: #{tpu_custom_call.1} parent=1 // pred_check_branch
      %69 = sbr.rel (0) target = $region29
    $region28: #{tpu_custom_call.1} parent=1 // pred_region
      %71 = dma.done [#allocation6], 384
    $region29: #{tpu_custom_call.1} parent=1 // pred_fallthru
      _
    // Predicated region
    $region30: #{tpu_custom_call.1} parent=1 // pred_check
      _
    $region31: #{tpu_custom_call.1} parent=1 // pred_check_branch
      %73 = sbr.rel (0) target = $region33
    $region32: #{tpu_custom_call.1} parent=1 // pred_region
      %75 = dma.done [#allocation6], 32
    $region33: #{tpu_custom_call.1} parent=1 // pred_fallthru
      _
    // Predicated region
    $region34: #{tpu_custom_call.1} parent=1 // pred_check
      _
    $region35: #{tpu_custom_call.1} parent=1 // pred_check_branch
      %77 = sbr.rel (0) target = $region37
    $region36: #{tpu_custom_call.1} parent=1 // pred_region
      %79 = dma.done [#allocation9], 2048
    $region37: #{tpu_custom_call.1} parent=1 // pred_fallthru
      _
    %v81 = vld [vmem:[#allocation2] sm:$0x3]
    %v82 = vpack.c.bf16 %v81, %v81
    %v83 = vld [vmem:[#allocation5] sm:$0xff]
    %v84 = vld [vmem:[#allocation5 + $0x8] sm:$0xff]
    %v85 = vld [vmem:[#allocation5 + $0x10] sm:$0x33]
    %v86 = vld [vmem:[#allocation7] sm:$0x3]
    %v88 = vperm.slane %v86, 0
    %v89 = vperm.slane %v86, 1
    %v95 = vunpack.c.l.b16 %v83
    %v96 = vunpack.c.h.b16 %v83
    %v97 = vunpack.c.l.b16 %v84
    %v98 = vunpack.c.h.b16 %v84
    %v99 = vunpack.c.l.b16 %v85
    %v100 = vunpack.c.h.b16 %v85
    %v101 = vpack.c.b16 %v97, %v95
    %v102 = vpack.c.b16 %v98, %v96
    %v103 = vpack.c.b16 %v99, %v99
    %v104 = vpack.c.b16 %v100, %v100
    %vm107 = vcmask 162816
    %v109 = vsel %vm107, %v82, 0
    %vm111 = vcmask 1041408
    %v113 = vsel %vm111, %v103, 0
    %v116 = vsel %vm111, %v104, 0
    %118 = vmatpush.bf16.msra.mxu0 0
    %119 = vmatpush.bf16.msra.mxu0 0
    %120 = vmatpush.bf16.msra.mxu0 0
    %121 = vmatpush.bf16.msra.mxu0 0
    %122 = vmatpush.bf16.msra.mxu0 0
    %123 = vmatpush.bf16.msra.mxu0 0
    %124 = vmatpush.bf16.msra.mxu0 %v113
    %125 = vmatpush.bf16.msra.mxu0 %v101
    %126 = vmatmul.bf16.gmra.mxu0 %v109
    %v127 = vpop.f32.mrf.mxu0
    %v128 = vadd.f32 %v88, %v127
    %v129 = vpop.f32.mrf.mxu0
    %130 = vdwg.mxu0
    %131 = vmatpush.bf16.msra.mxu0 0
    %132 = vmatpush.bf16.msra.mxu0 0
    %133 = vmatpush.bf16.msra.mxu0 0
    %134 = vmatpush.bf16.msra.mxu0 0
    %135 = vmatpush.bf16.msra.mxu0 0
    %136 = vmatpush.bf16.msra.mxu0 0
    %137 = vmatpush.bf16.msra.mxu0 %v116
    %138 = vmatpush.bf16.msra.mxu0 %v102
    %139 = vmatmul.bf16.gmra.mxu0 %v109
    %v140 = vpop.f32.mrf.mxu0
    %v141 = vadd.f32 %v89, %v140
    %v142 = vpop.f32.mrf.mxu0
    %143 = vdwg.mxu0
    %v144 = vmax.f32 %v128, 0.0
    %v145 = vmax.f32 %v141, 0.0
    %v146 = vpack.c.bf16 %v144, %v144
    %v147 = vpack.c.bf16 %v145, %v145
    %v148 = vld [vmem:[#allocation8] sm:$0xf]
    %v149 = vld [vmem:[#allocation8 + $0x4] sm:$0xf]
    %v150 = vld [vmem:[#allocation8 + $0x8] sm:$0xf]
    %v151 = vld [vmem:[#allocation8 + $0xc] sm:$0xf]
    %v152 = vld [vmem:[#allocation8 + $0x10] sm:$0xf]
    %v153 = vld [vmem:[#allocation8 + $0x14] sm:$0xf]
    %v154 = vld [vmem:[#allocation8 + $0x18] sm:$0xf]
    %v155 = vld [vmem:[#allocation8 + $0x1c] sm:$0xf]
    %v156 = vld [vmem:[#allocation8 + $0x20] sm:$0xf]
    %v157 = vld [vmem:[#allocation8 + $0x24] sm:$0xf]
    %v158 = vld [vmem:[#allocation8 + $0x28] sm:$0xf]
    %v159 = vld [vmem:[#allocation8 + $0x2c] sm:$0xf]
    %v160 = vld [vmem:[#allocation8 + $0x30] sm:$0xf]
    %v161 = vld [vmem:[#allocation8 + $0x34] sm:$0xf]
    %v162 = vld [vmem:[#allocation8 + $0x38] sm:$0xf]
    %v163 = vld [vmem:[#allocation8 + $0x3c] sm:$0xf]
    %v164 = vld [vmem:[#allocation8 + $0x40] sm:$0xf]
    %v165 = vld [vmem:[#allocation8 + $0x44] sm:$0xf]
    %v166 = vld [vmem:[#allocation8 + $0x48] sm:$0xf]
    %v167 = vld [vmem:[#allocation8 + $0x4c] sm:$0xf]
    %v168 = vld [vmem:[#allocation8 + $0x50] sm:$0xf]
    %v169 = vld [vmem:[#allocation8 + $0x54] sm:$0xf]
    %v170 = vld [vmem:[#allocation8 + $0x58] sm:$0xf]
    %v171 = vld [vmem:[#allocation8 + $0x5c] sm:$0xf]
    %v172 = vld [vmem:[#allocation8 + $0x60] sm:$0xf]
    %v173 = vld [vmem:[#allocation8 + $0x64] sm:$0xf]
    %v174 = vld [vmem:[#allocation8 + $0x68] sm:$0xf]
    %v175 = vld [vmem:[#allocation8 + $0x6c] sm:$0xf]
    %v176 = vld [vmem:[#allocation8 + $0x70] sm:$0xf]
    %v177 = vld [vmem:[#allocation8 + $0x74] sm:$0xf]
    %v178 = vld [vmem:[#allocation8 + $0x78] sm:$0xf]
    %v179 = vld [vmem:[#allocation8 + $0x7c] sm:$0xf]
    %v180 = vld [vmem:[%s4] sm:$0x1]
    %v182 = vperm.slane %v180, 0
    %v216 = vunpack.c.l.b16 %v148
    %v217 = vunpack.c.l.b16 %v149
    %v218 = vunpack.c.l.b16 %v150
    %v219 = vunpack.c.l.b16 %v151
    %v220 = vunpack.c.l.b16 %v152
    %v221 = vunpack.c.l.b16 %v153
    %v222 = vunpack.c.l.b16 %v154
    %v223 = vunpack.c.l.b16 %v155
    %v224 = vunpack.c.l.b16 %v156
    %v225 = vunpack.c.l.b16 %v157
    %v226 = vunpack.c.l.b16 %v158
    %v227 = vunpack.c.l.b16 %v159
    %v228 = vunpack.c.l.b16 %v160
    %v229 = vunpack.c.l.b16 %v161
    %v230 = vunpack.c.l.b16 %v162
    %v231 = vunpack.c.l.b16 %v163
    %v232 = vunpack.c.l.b16 %v164
    %v233 = vunpack.c.l.b16 %v165
    %v234 = vunpack.c.l.b16 %v166
    %v235 = vunpack.c.l.b16 %v167
    %v236 = vunpack.c.l.b16 %v168
    %v237 = vunpack.c.l.b16 %v169
    %v238 = vunpack.c.l.b16 %v170
    %v239 = vunpack.c.l.b16 %v171
    %v240 = vunpack.c.l.b16 %v172
    %v241 = vunpack.c.l.b16 %v173
    %v242 = vunpack.c.l.b16 %v174
    %v243 = vunpack.c.l.b16 %v175
    %v244 = vunpack.c.l.b16 %v176
    %v245 = vunpack.c.l.b16 %v177
    %v246 = vunpack.c.l.b16 %v178
    %v247 = vunpack.c.l.b16 %v179
    %v248 = vpack.c.b16 %v217, %v216
    %v249 = vpack.c.b16 %v219, %v218
    %v250 = vpack.c.b16 %v221, %v220
    %v251 = vpack.c.b16 %v223, %v222
    %v252 = vpack.c.b16 %v225, %v224
    %v253 = vpack.c.b16 %v227, %v226
    %v254 = vpack.c.b16 %v229, %v228
    %v255 = vpack.c.b16 %v231, %v230
    %v256 = vpack.c.b16 %v233, %v232
    %v257 = vpack.c.b16 %v235, %v234
    %v258 = vpack.c.b16 %v237, %v236
    %v259 = vpack.c.b16 %v239, %v238
    %v260 = vpack.c.b16 %v241, %v240
    %v261 = vpack.c.b16 %v243, %v242
    %v262 = vpack.c.b16 %v245, %v244
    %v263 = vpack.c.b16 %v247, %v246
    %280 = vmatpush.bf16.msra.mxu0 %v255
    %281 = vmatpush.bf16.msra.mxu0 %v254
    %282 = vmatpush.bf16.msra.mxu0 %v253
    %283 = vmatpush.bf16.msra.mxu0 %v252
    %284 = vmatpush.bf16.msra.mxu0 %v251
    %285 = vmatpush.bf16.msra.mxu0 %v250
    %286 = vmatpush.bf16.msra.mxu0 %v249
    %287 = vmatpush.bf16.msra.mxu0 %v248
    %288 = vmatmul.bf16.gmra.mxu0 %v146
    %v289 = vpop.f32.mrf.mxu0
    %v290 = vadd.f32 %v182, %v289
    %v291 = vpop.f32.mrf.mxu0
    %292 = vdwg.mxu0
    %293 = vmatpush.bf16.msra.mxu0 %v263
    %294 = vmatpush.bf16.msra.mxu0 %v262
    %295 = vmatpush.bf16.msra.mxu0 %v261
    %296 = vmatpush.bf16.msra.mxu0 %v260
    %297 = vmatpush.bf16.msra.mxu0 %v259
    %298 = vmatpush.bf16.msra.mxu0 %v258
    %299 = vmatpush.bf16.msra.mxu0 %v257
    %300 = vmatpush.bf16.msra.mxu0 %v256
    %301 = vmatmul.bf16.gmra.mxu0 %v147
    %v302 = vpop.f32.mrf.mxu0
    %v303 = vadd.f32 %v290, %v302
    %v304 = vpop.f32.mrf.mxu0
    %305 = vdwg.mxu0
    %306 = vst [vmem:[#allocation10] sm:$0x3] %v303
    // Predicated region
    $region38: #{tpu_custom_call.1} parent=1 // pred_check
      _
    $region39: #{tpu_custom_call.1} parent=1 // pred_check_branch
      %308 = sbr.rel (0) target = $region41
    $region40: #{tpu_custom_call.1} parent=1 // pred_region
      %310 = vsyncadd [#allocation4], 0
      %s312 = sshll.u32 [#allocation10], 4
      %s313 = int_to_ptr.vmem [resolvable:$true] %s312
      %s314 = sshll.u32 %s5, 4
      %s315 = int_to_ptr.hbm [resolvable:$true] %s314
      %317 = dma.vmem_to_hbm [thread:$0]  %s313, 32, %s315, [#allocation4]
    $region41: #{tpu_custom_call.1} parent=1 // pred_fallthru
      _
    // Predicated region
    $region42: #{tpu_custom_call.1} parent=1 // pred_check
      _
    $region43: #{tpu_custom_call.1} parent=1 // pred_check_branch
      %319 = sbr.rel (0) target = $region45
    $region44: #{tpu_custom_call.1} parent=1 // pred_region
      %321 = dma.done [#allocation4], 32
    $region45: #{tpu_custom_call.1} parent=1 // pred_fallthru
      _
    %322 = vsyncpa [#allocation3], 1
    %323 = vsyncpa [#allocation6], 1
    %324 = vsyncpa [#allocation9], 1
    %325 = vsyncpa [#allocation4], 1

</llo_original>
